<compile_context>
chip_gen: v7x
topology: tpu7x:2x2x1
jax: 0.10.0
libtpu: 0.0.40
codegen_flags: <defaults>
</compile_context>

<pallas_src>
import functools

import jax
import jax.numpy as jnp
from jax import lax
from jax.experimental import pallas as pl
from jax.experimental.pallas import tpu as pltpu


def _reprogram_kernel(toks_ref, emb_ref, mean_ref, std_ref,
                      out_ref, ssq_ref, *, rows_valid):
    # toks_ref : (M_pad,)    int32 SMEM (scalar prefetch) token id per patch row
    # emb_ref  : (V, D)      f32/bf16 VMEM embedding table (resident block)
    # mean_ref : (1, D)      f32 VMEM per-element image mean (channel-broadcast)
    # std_ref  : (1, D)      f32 VMEM per-element image std
    # out_ref  : (TM, D)     f32 VMEM output tile (clipped & re-normalized)
    # ssq_ref  : (1, 8, 128) f32 VMEM per-tile partial sum-of-squares (broadcast)
    tile = pl.program_id(0)
    tm = out_ref.shape[0]
    base = tile * tm

    # Row gather + tanh: dynamic leading-dim indexing, each row is a lane-dense
    # (1, D) vector.  Upcast in-register so a bf16 table is supported.
    def gather_row(r, carry):
        tok = toks_ref[base + r]
        row = emb_ref[pl.ds(tok, 1), :].astype(jnp.float32)       # (1, D)
        out_ref[pl.ds(r, 1), :] = jnp.tanh(row)
        return carry

    lax.fori_loop(0, tm, gather_row, 0)

    e = out_ref[...]                                              # (TM, D) f32

    # Partial ||reprogrammed_image||^2 for this tile; mask padding rows >= M.
    row_ids = base + lax.broadcasted_iota(jnp.int32, (tm, 1), 0)
    valid = (row_ids < rows_valid).astype(jnp.float32)
    partial_ssq = jnp.sum((e * e) * valid)
    ssq_ref[...] = jnp.broadcast_to(partial_ssq, ssq_ref.shape)

    # unnormalize -> clip to [0, 1] -> renormalize (all elementwise on VPU).
    mean = mean_ref[...]
    std = std_ref[...]
    unnormalized = e * std + mean
    clipped = jnp.clip(unnormalized, 0.0, 1.0)
    out_ref[...] = (clipped - mean) / std


def reprogramming_forward(sentence_batch, emb_weight, *, img_patch_size,
                          img_size, img_mean=(0.5, 0.5, 0.5),
                          img_std=(0.5, 0.5, 0.5)):
    """JAX/Pallas equivalent of ReprogrammingFuntion.forward (img_path=None)."""
    N, L = sentence_batch.shape
    V, D = emb_weight.shape
    P = img_patch_size
    assert D == 3 * P * P, "embedding dim must be 3 * P * P"
    assert img_size % P == 0
    npr = img_size // P
    num_patches = npr * npr
    M = N * num_patches

    # Glue: one token id per output patch row (repeat last token past L).
    patch_l = jnp.minimum(jnp.arange(num_patches), L - 1)
    toks = sentence_batch[:, patch_l].reshape(M).astype(jnp.int32)

    # Tile the patch-row axis; budget against v7x's 32 MiB scoped-VMEM default
    # (embedding table + double-buffered f32 output tile must fit).
    # TODO(synk): for vocab tables too large for VMEM, switch the embedding
    # input to memory_space=pl.ANY and gather rows with per-row async copies.
    emb_itemsize = jnp.dtype(emb_weight.dtype).itemsize
    budget = 24 * 1024 * 1024
    fixed = 2 * V * D * emb_itemsize + 4 * D * 4 + 2 * 8 * 128 * 4
    per_row = 2 * D * 4
    rows_fit = max(8, (budget - fixed) // per_row)
    TM = int(min(512, rows_fit, ((M + 7) // 8) * 8))
    TM = max(8, (TM // 8) * 8)
    num_tiles = -(-M // TM)
    M_pad = num_tiles * TM
    toks_pad = jnp.pad(toks, (0, M_pad - M))     # padding rows gather token 0

    # Per-element (channel-broadcast) mean/std vectors in patch layout.
    mean_vec = jnp.repeat(jnp.asarray(img_mean, jnp.float32), P * P)[None, :]
    std_vec = jnp.repeat(jnp.asarray(img_std, jnp.float32), P * P)[None, :]

    vmem_limit = int(min(max(fixed + 2 * TM * D * 4 + (4 << 20), 16 << 20),
                         48 << 20))

    kernel = functools.partial(_reprogram_kernel, rows_valid=M)
    out, ssq = pl.pallas_call(
        kernel,
        out_shape=(jax.ShapeDtypeStruct((M_pad, D), jnp.float32),
                   jax.ShapeDtypeStruct((num_tiles, 8, 128), jnp.float32)),
        grid_spec=pltpu.PrefetchScalarGridSpec(
            num_scalar_prefetch=1,
            grid=(num_tiles,),
            in_specs=[
                pl.BlockSpec((V, D), lambda i, tok_ref: (0, 0)),   # emb (resident)
                pl.BlockSpec((1, D), lambda i, tok_ref: (0, 0)),   # mean
                pl.BlockSpec((1, D), lambda i, tok_ref: (0, 0)),   # std
            ],
            out_specs=(
                pl.BlockSpec((TM, D), lambda i, tok_ref: (i, 0)),          # patches
                pl.BlockSpec((1, 8, 128), lambda i, tok_ref: (i, 0, 0)),   # partial ssq
            )),
        compiler_params=pltpu.CompilerParams(
            dimension_semantics=("parallel",),
            vmem_limit_bytes=vmem_limit),
    )(toks_pad, emb_weight, mean_vec, std_vec)

    # pert_norm = ||reprogrammed_image||_2 / N from per-tile partial sums.
    pert_norm = jnp.sqrt(jnp.sum(ssq[:, 0, 0])) / jnp.float32(N)

    # Glue: patch-major rows -> NCHW image.
    # TODO(synk): fuse this scatter into the out_spec (write NCHW directly from
    # the kernel) to avoid one extra full-image HBM round trip.
    img = (out[:M].reshape(N, npr, npr, 3, P, P)
              .transpose(0, 3, 1, 4, 2, 5)
              .reshape(N, 3, img_size, img_size))
    return img, pert_norm


def _reference(sentence_batch, emb_weight, P, img_size, img_mean, img_std):
    """Pure-JAX port of the PyTorch forward for verification."""
    N, L = sentence_batch.shape
    e = jnp.tanh(emb_weight[sentence_batch]).reshape(N, L, 3, P, P)
    npr = img_size // P
    num_patches = npr * npr
    img = jnp.zeros((N, 3, img_size, img_size), jnp.float32)
    for patch_idx in range(num_patches):
        i = (patch_idx // npr) * P
        j = (patch_idx % npr) * P
        l = patch_idx if patch_idx < L else L - 1
        img = img.at[:, :, i:i + P, j:j + P].set(e[:, l])
    pert = jnp.sqrt(jnp.sum(img * img)) / N
    mean = jnp.asarray(img_mean, jnp.float32)[None, :, None, None]
    std = jnp.asarray(img_std, jnp.float32)[None, :, None, None]
    un = img * std + mean
    cl = jnp.clip(un, 0.0, 1.0)
    return (cl - mean) / std, pert


if __name__ == "__main__":
    # Small shapes consistent with the module (default patch size 16 -> D=768,
    # which is lane-dense; 64x64 image -> 16 patches per image).
    vocab_size = 128
    img_patch_size = 16
    img_size = 64
    N, L = 2, 8
    D = 3 * img_patch_size * img_patch_size

    key = jax.random.PRNGKey(0)
    k_emb, k_tok = jax.random.split(key)
    # nn.Embedding default init: N(0, 1)
    emb_weight = jax.random.normal(k_emb, (vocab_size, D), dtype=jnp.float32)
    sentence_batch = jax.random.randint(k_tok, (N, L), 0, vocab_size,
                                        dtype=jnp.int32)

    img, pert_norm = reprogramming_forward(
        sentence_batch, emb_weight,
        img_patch_size=img_patch_size, img_size=img_size)
    jax.block_until_ready((img, pert_norm))

    ref_img, ref_norm = _reference(sentence_batch, emb_weight, img_patch_size,
                                   img_size, (0.5, 0.5, 0.5), (0.5, 0.5, 0.5))

    assert img.shape == (N, 3, img_size, img_size)
    assert jnp.allclose(img, ref_img, rtol=1e-4, atol=1e-5), "image mismatch"
    assert jnp.allclose(pert_norm, ref_norm, rtol=1e-4, atol=1e-5), "norm mismatch"

    print("KERNEL_OK")
</pallas_src>

<mosaic_0001>
module attributes {stable_mosaic.version = 11 : i64} {
  func.func @_reprogram_kernel(%arg0: i32, %arg1: memref<32xi32, #tpu.memory_space<smem>>, %arg2: memref<128x768xf32, #tpu.memory_space<vmem>>, %arg3: memref<1x768xf32, #tpu.memory_space<vmem>>, %arg4: memref<1x768xf32, #tpu.memory_space<vmem>>, %arg5: memref<32x768xf32, #tpu.memory_space<vmem>>, %arg6: memref<1x8x128xf32, #tpu.memory_space<vmem>>) attributes {dimension_semantics = [#tpu.dimension_semantics<parallel>], iteration_bounds = array<i64: 1>, scalar_prefetch = 1 : i64, scratch_operands = 0 : i64, tpu.core_type = #tpu.core_type<tc>, window_params = [{pipeline_mode = #tpu.pipeline_mode<synchronous>, transform_indices = @transform_0, window_bounds = array<i64: 128, 768>}, {pipeline_mode = #tpu.pipeline_mode<synchronous>, transform_indices = @transform_1, window_bounds = array<i64: 1, 768>}, {pipeline_mode = #tpu.pipeline_mode<synchronous>, transform_indices = @transform_2, window_bounds = array<i64: 1, 768>}, {transform_indices = @transform_3, window_bounds = array<i64: 32, 768>}, {transform_indices = @transform_4, window_bounds = array<i64: 1, 8, 128>}]} {
    %c32_i32 = arith.constant 32 : i32
    %0 = arith.muli %arg0, %c32_i32 : i32
    %c0_i32 = arith.constant 0 : i32
    %c32_i32_0 = arith.constant 32 : i32
    %1 = arith.addi %c0_i32, %c32_i32_0 : i32
    %c1_i32 = arith.constant 1 : i32
    scf.for %arg7 = %c0_i32 to %1 step %c1_i32  : i32 {
      %34 = arith.addi %0, %arg7 : i32
      %35 = arith.index_cast %34 : i32 to index
      %36 = memref.load %arg1[%35] : memref<32xi32, #tpu.memory_space<smem>>
      %37 = arith.index_cast %36 : i32 to index
      %c0_15 = arith.constant 0 : index
      %38 = vector.load %arg2[%37, %c0_15] : memref<128x768xf32, #tpu.memory_space<vmem>>, vector<1x768xf32>
      %39 = math.tanh %38 : vector<1x768xf32>
      %40 = arith.index_cast %arg7 : i32 to index
      %c0_16 = arith.constant 0 : index
      %41 = vector.load %arg5[%40, %c0_16] : memref<32x768xf32, #tpu.memory_space<vmem>>, vector<1x768xf32>
      tpu.vector_store %arg5[%40, %c0_16], %39 {strides = array<i32>} : memref<32x768xf32, #tpu.memory_space<vmem>>, vector<1x768xf32>,
    }
    %c32_i32_1 = arith.constant 32 : i32
    %c0 = arith.constant 0 : index
    %c0_2 = arith.constant 0 : index
    %2 = vector.load %arg5[%c0, %c0_2] : memref<32x768xf32, #tpu.memory_space<vmem>>, vector<32x768xf32>
    %3 = tpu.iota {dimensions = array<i32: 0>} : vector<32x1xi32>
    %4 = vector.broadcast %0 : i32 to vector<32x1xi32>
    %5 = arith.addi %4, %3 : vector<32x1xi32>
    %c32_i32_3 = arith.constant 32 : i32
    %6 = vector.broadcast %c32_i32_3 : i32 to vector<32x1xi32>
    %7 = arith.cmpi slt, %5, %6 : vector<32x1xi32>
    %8 = arith.extui %7 : vector<32x1xi1> to vector<32x1xi32>
    %9 = arith.sitofp %8 : vector<32x1xi32> to vector<32x1xf32>
    %10 = arith.mulf %2, %2 : vector<32x768xf32>
    %11 = vector.broadcast %9 : vector<32x1xf32> to vector<32x768xf32>
    %12 = arith.mulf %10, %11 : vector<32x768xf32>
    %13 = vector.shape_cast %12 : vector<32x768xf32> to vector<1x32x768xf32>
    %cst = arith.constant dense<0.000000e+00> : vector<1xf32>
    %14 = vector.multi_reduction <add>, %13, %cst [1, 2] : vector<1x32x768xf32> to vector<1xf32>
    %15 = vector.shape_cast %14 : vector<1xf32> to vector<1x1x1xf32>
    %16 = vector.extract %15[0, 0, 0] : f32 from vector<1x1x1xf32>
    %17 = vector.broadcast %16 : f32 to vector<1x8x128xf32>
    %c0_4 = arith.constant 0 : index
    %c0_5 = arith.constant 0 : index
    %c0_6 = arith.constant 0 : index
    %18 = vector.load %arg6[%c0_4, %c0_5, %c0_6] : memref<1x8x128xf32, #tpu.memory_space<vmem>>, vector<1x8x128xf32>
    tpu.vector_store %arg6[%c0_4, %c0_5, %c0_6], %17 {strides = array<i32>} : memref<1x8x128xf32, #tpu.memory_space<vmem>>, vector<1x8x128xf32>,
    %c0_7 = arith.constant 0 : index
    %c0_8 = arith.constant 0 : index
    %19 = vector.load %arg3[%c0_7, %c0_8] : memref<1x768xf32, #tpu.memory_space<vmem>>, vector<1x768xf32>
    %c0_9 = arith.constant 0 : index
    %c0_10 = arith.constant 0 : index
    %20 = vector.load %arg4[%c0_9, %c0_10] : memref<1x768xf32, #tpu.memory_space<vmem>>, vector<1x768xf32>
    %21 = vector.broadcast %20 : vector<1x768xf32> to vector<32x768xf32>
    %22 = arith.mulf %2, %21 : vector<32x768xf32>
    %23 = vector.broadcast %19 : vector<1x768xf32> to vector<32x768xf32>
    %24 = arith.addf %22, %23 : vector<32x768xf32>
    %cst_11 = arith.constant 0.000000e+00 : f32
    %cst_12 = arith.constant 1.000000e+00 : f32
    %25 = vector.broadcast %cst_11 : f32 to vector<32x768xf32>
    %26 = arith.maximumf %25, %24 : vector<32x768xf32>
    %27 = vector.broadcast %cst_12 : f32 to vector<32x768xf32>
    %28 = arith.minimumf %27, %26 : vector<32x768xf32>
    %29 = vector.broadcast %19 : vector<1x768xf32> to vector<32x768xf32>
    %30 = arith.subf %28, %29 : vector<32x768xf32>
    %31 = vector.broadcast %20 : vector<1x768xf32> to vector<32x768xf32>
    %32 = arith.divf %30, %31 : vector<32x768xf32>
    %c0_13 = arith.constant 0 : index
    %c0_14 = arith.constant 0 : index
    %33 = vector.load %arg5[%c0_13, %c0_14] : memref<32x768xf32, #tpu.memory_space<vmem>>, vector<32x768xf32>
    tpu.vector_store %arg5[%c0_13, %c0_14], %32 {strides = array<i32>} : memref<32x768xf32, #tpu.memory_space<vmem>>, vector<32x768xf32>,
    return
  }
  func.func @transform_0(%arg0: i32, %arg1: memref<32xi32, #tpu.memory_space<smem>>) -> (i32, i32) {
    %c0_i32 = arith.constant 0 : i32
    %c0_i32_0 = arith.constant 0 : i32
    %c0_i32_1 = arith.constant 0 : i32
    return %c0_i32, %c0_i32_0 : i32, i32
  }
  func.func @transform_1(%arg0: i32, %arg1: memref<32xi32, #tpu.memory_space<smem>>) -> (i32, i32) {
    %c0_i32 = arith.constant 0 : i32
    %c0_i32_0 = arith.constant 0 : i32
    %c0_i32_1 = arith.constant 0 : i32
    return %c0_i32, %c0_i32_0 : i32, i32
  }
  func.func @transform_2(%arg0: i32, %arg1: memref<32xi32, #tpu.memory_space<smem>>) -> (i32, i32) {
    %c0_i32 = arith.constant 0 : i32
    %c0_i32_0 = arith.constant 0 : i32
    %c0_i32_1 = arith.constant 0 : i32
    return %c0_i32, %c0_i32_0 : i32, i32
  }
  func.func @transform_3(%arg0: i32, %arg1: memref<32xi32, #tpu.memory_space<smem>>) -> (i32, i32) {
    %c0_i32 = arith.constant 0 : i32
    %c0_i32_0 = arith.constant 0 : i32
    return %arg0, %c0_i32 : i32, i32
  }
  func.func @transform_4(%arg0: i32, %arg1: memref<32xi32, #tpu.memory_space<smem>>) -> (i32, i32, i32) {
    %c0_i32 = arith.constant 0 : i32
    %c0_i32_0 = arith.constant 0 : i32
    %c0_i32_1 = arith.constant 0 : i32
    return %arg0, %c0_i32, %c0_i32_0 : i32, i32, i32
  }
}

</mosaic_0001>

<llo_original>
// kernel: tpu_custom_call.1
$region0: #{tpu_custom_call.1}
  #allocation0 [shape = 'u32[]', space=smem, size = 0x4, offset = 0x4, fixed_abs, tag = 'smem constant byte address 0x4 - core index']
  #allocation1 [shape = 'u32[144,128]{1,0:T(1,128)}', space=vmem, size = 0x12000, scoped, tag = 'internal scratch']
  #allocation2 [shape = 's32[1]{0}', space=sflag, size = 0x4, scoped, tag = 'scoped memory for tpu_custom_call.1']
  #allocation3 [shape = 'u8[512]{0}', space=smem, size = 0x200, scoped, tag = 'prefetched SMEM operand 0']
  %s0 = inlined_call_operand.hbm [shape: s32[32], index: 0, kind: input, shape index: {}]
  %s1 = inlined_call_operand.hbm [shape: f32[128,768], index: 1, kind: input, shape index: {}]
  %s2 = inlined_call_operand.vmem [shape: f32[1,768], index: 2, kind: input, shape index: {}]
  %s3 = inlined_call_operand.hbm [shape: f32[1,768], index: 3, kind: input, shape index: {}]
  %s4 = inlined_call_operand.hbm [shape: f32[32,768], index: 4, kind: output, shape index: {0}]
  %s5 = inlined_call_operand.hbm [shape: f32[1,8,128], index: 5, kind: output, shape index: {1}]
  %6 = xla_tuple %s4, %s5
  %s7 = sld [smem:[#allocation0]]
  $region45: #{tpu_custom_call.1} parent=0
    _
  %s9 = ssub.s32 1, %s7
  %s10 = scalar_select 0, %s9, %s7
  %12 = dma.hbm_to_smem %s0, 16, [#allocation3], [#allocation2]
  %13 = dma.done [#allocation2], 16
  %14 = sfence
  $region1: #{tpu_custom_call.1} parent=0
    #allocation4 [shape = 'u8[393216]{0}', space=vmem, size = 0x60000, scoped, tag = 'input window, operand 1, single buffered']
    #allocation5 [shape = 's32[1]{0}', space=sflag, size = 0x4, scoped, tag = 'scoped memory for tpu_custom_call.1']
    #allocation6 [shape = 's32[1]{0}', space=sflag, size = 0x4, scoped, tag = 'scoped memory for tpu_custom_call.1']
    #allocation7 [shape = 'u8[3072]{0}', space=vmem, size = 0xc00, scoped, tag = 'input window, operand 3, single buffered']
    #allocation8 [shape = 's32[1]{0}', space=sflag, size = 0x4, scoped, tag = 'scoped memory for tpu_custom_call.1']
    #allocation9 [shape = 'u8[98304]{0}', space=vmem, size = 0x18000, scoped, tag = 'output window, operand 0, single buffered']
    #allocation10 [shape = 'u8[4096]{0}', space=vmem, size = 0x1000, scoped, tag = 'output window, operand 1, single buffered']
    #allocation11 [shape = 's32[1]{0}', space=sflag, size = 0x4, scoped, tag = 'scoped memory for tpu_custom_call.1']
    %15 = vsyncpa [#allocation5], 0
    %16 = vsyncpa [#allocation8], 0
    %17 = vsyncpa [#allocation6], 0
    %18 = vsyncpa [#allocation11], 0
    // Predicated region
    $region2: #{tpu_custom_call.1} parent=1 // pred_check
      _
    $region3: #{tpu_custom_call.1} parent=1 // pred_check_branch
      %20 = sbr.rel (0) target = $region5
    $region4: #{tpu_custom_call.1} parent=1 // pred_region
      %s22 = ssub.s32 12288, 12288
      %23 = vsyncadd [#allocation5], %s22
      %s24 = sshll.u32 [#allocation4], 4
      %s25 = int_to_ptr.vmem [resolvable:$true] %s24
      %30 = dma.hbm_to_vmem [thread:$0]  %s1, 12288, %s25, [#allocation5], 768, 768, 48
    $region5: #{tpu_custom_call.1} parent=1 // pred_fallthru
      _
    // Predicated region
    $region6: #{tpu_custom_call.1} parent=1 // pred_check
      _
    $region7: #{tpu_custom_call.1} parent=1 // pred_check_branch
      %32 = sbr.rel (0) target = $region9
    $region8: #{tpu_custom_call.1} parent=1 // pred_region
      _
    $region9: #{tpu_custom_call.1} parent=1 // pred_fallthru
      _
    // Predicated region
    $region10: #{tpu_custom_call.1} parent=1 // pred_check
      _
    $region11: #{tpu_custom_call.1} parent=1 // pred_check_branch
      %34 = sbr.rel (0) target = $region13
    $region12: #{tpu_custom_call.1} parent=1 // pred_region
      %s36 = ssub.s32 96, 96
      %37 = vsyncadd [#allocation8], %s36
      %s39 = sshll.u32 [#allocation7], 4
      %s40 = int_to_ptr.vmem [resolvable:$true] %s39
      %42 = dma.hbm_to_vmem [thread:$0]  %s3, 96, %s40, [#allocation8]
    $region13: #{tpu_custom_call.1} parent=1 // pred_fallthru
      _
    // Predicated region
    $region14: #{tpu_custom_call.1} parent=1 // pred_check
      _
    $region15: #{tpu_custom_call.1} parent=1 // pred_check_branch
      %44 = sbr.rel (0) target = $region17
    $region16: #{tpu_custom_call.1} parent=1 // pred_region
      %45 = dma.done [#allocation5], 12288
    $region17: #{tpu_custom_call.1} parent=1 // pred_fallthru
      _
    // Predicated region
    $region18: #{tpu_custom_call.1} parent=1 // pred_check
      _
    $region19: #{tpu_custom_call.1} parent=1 // pred_check_branch
      %47 = sbr.rel (0) target = $region21
    $region20: #{tpu_custom_call.1} parent=1 // pred_region
      %48 = dma.done [#allocation8], 96
    $region21: #{tpu_custom_call.1} parent=1 // pred_fallthru
      _
    %s49 = smul.u32 0, 32
    loop: start=0, step=1, limit=32
    $region22: #{tpu_custom_call.1} parent=1 // loop_pre_header
      _
    $region23: #{tpu_custom_call.1} parent=1 // loop_header
      %s51 = sphi 0, %s55
      %p52 = scmp.ge.s32.totalorder %s51, 32
    $region24: #{tpu_custom_call.1} parent=1 // loop_header_branch
      %54 = sbr.rel (%p52) target = $region28
    $region25: #{tpu_custom_call.1} parent=1 // loop_body
      %s56 = sadd.s32 %s49, %s51
      %s57 = sld [smem:[#allocation3 + %s56]]
      %s58 = sshra.s32 %s57, 3
      %s59 = sand.u32 %s57, 7
      %s60 = sshra.s32 %s57, 3
      %s61 = sand.u32 %s57, 7
      %s62 = smul.u32 %s58, 6
      %s63 = smul.u32 %s62, 8
      %s64 = sadd.s32 %s63, %s61
      %s65 = scalar_lea.vmem [#allocation4], %s64
      %v66 = vld [vmem:[%s65] ss:$8 sm:$0xf]
      %v67 = vld [vmem:[%s65] ss:$8 sm:$0x30]
      %v68 = vor.u32 %v66, %v67
      %v69 = vtanh.pop %v68
      %v70 = vlaneseq
      %vm71 = vcmp.ge.s32.totalorder %v70, 0
      %vm72 = vcmp.lt.s32.totalorder %v70, 768
      %vm73 = vmand %vm71, %vm72
      %s74 = sshra.s32 %s51, 3
      %s75 = sand.u32 %s51, 7
      %s76 = sshra.s32 %s51, 3
      %s77 = sand.u32 %s51, 7
      %s78 = smul.u32 %s74, 6
      %s79 = smul.u32 %s78, 8
      %s80 = sadd.s32 %s79, %s77
      %s81 = scalar_lea.vmem [#allocation9], %s80
      %82 = vst.msk [vmem:[%s81] ss:$8 sm:$0xf] %vm73, %v69
      %83 = vst.msk [vmem:[%s81] ss:$8 sm:$0x30] %vm73, %v69
    $region26: #{tpu_custom_call.1} parent=1 // loop_footer
      %s55 = sadd.s32 1, %s51
    $region27: #{tpu_custom_call.1} parent=1 // loop_footer_branch
      %50 = sbr.rel target = $region23
    $region28: #{tpu_custom_call.1} parent=1 // loop_exit
      _
    %v84 = vld [vmem:[#allocation9] sm:$0xff]
    %v85 = vld [vmem:[#allocation9 + $0x8] sm:$0xff]
    %v86 = vld [vmem:[#allocation9 + $0x10] sm:$0xff]
    %v87 = vld [vmem:[#allocation9 + $0x18] sm:$0xff]
    %v88 = vld [vmem:[#allocation9 + $0x20] sm:$0xff]
    %v89 = vld [vmem:[#allocation9 + $0x28] sm:$0xff]
    %v90 = vld [vmem:[#allocation9 + $0x30] sm:$0xff]
    %v91 = vld [vmem:[#allocation9 + $0x38] sm:$0xff]
    %v92 = vld [vmem:[#allocation9 + $0x40] sm:$0xff]
    %v93 = vld [vmem:[#allocation9 + $0x48] sm:$0xff]
    %v94 = vld [vmem:[#allocation9 + $0x50] sm:$0xff]
    %v95 = vld [vmem:[#allocation9 + $0x58] sm:$0xff]
    %v96 = vld [vmem:[#allocation9 + $0x60] sm:$0xff]
    %v97 = vld [vmem:[#allocation9 + $0x68] sm:$0xff]
    %v98 = vld [vmem:[#allocation9 + $0x70] sm:$0xff]
    %v99 = vld [vmem:[#allocation9 + $0x78] sm:$0xff]
    %v100 = vld [vmem:[#allocation9 + $0x80] sm:$0xff]
    %v101 = vld [vmem:[#allocation9 + $0x88] sm:$0xff]
    %v102 = vld [vmem:[#allocation9 + $0x90] sm:$0xff]
    %v103 = vld [vmem:[#allocation9 + $0x98] sm:$0xff]
    %v104 = vld [vmem:[#allocation9 + $0xa0] sm:$0xff]
    %v105 = vld [vmem:[#allocation9 + $0xa8] sm:$0xff]
    %v106 = vld [vmem:[#allocation9 + $0xb0] sm:$0xff]
    %v107 = vld [vmem:[#allocation9 + $0xb8] sm:$0xff]
    %v108 = vlaneseq
    %v109 = vshrl.u32 %v108, 7
    %v110 = vadd.s32 %v109, 8
    %v111 = vadd.s32 %v109, 16
    %v112 = vadd.s32 %v109, 24
    %v113 = vstv %s49
    %v114 = vadd.s32 %v113, %v109
    %v115 = vadd.s32 %v113, %v110
    %v116 = vadd.s32 %v113, %v111
    %v117 = vadd.s32 %v113, %v112
    %vm118 = vcmp.lt.s32.totalorder %v114, 32
    %vm119 = vcmp.lt.s32.totalorder %v115, 32
    %vm120 = vcmp.lt.s32.totalorder %v116, 32
    %vm121 = vcmp.lt.s32.totalorder %v117, 32
    %v122 = vsel %vm118, 1, 0
    %v123 = vsel %vm119, 1, 0
    %v124 = vsel %vm120, 1, 0
    %v125 = vsel %vm121, 1, 0
    %v126 = vcvt.s32.f32 %v122
    %v127 = vcvt.s32.f32 %v123
    %v128 = vcvt.s32.f32 %v124
    %v129 = vcvt.s32.f32 %v125
    %v130 = vmul.f32 %v84, %v84
    %v131 = vmul.f32 %v85, %v85
    %v132 = vmul.f32 %v86, %v86
    %v133 = vmul.f32 %v87, %v87
    %v134 = vmul.f32 %v88, %v88
    %v135 = vmul.f32 %v89, %v89
    %v136 = vmul.f32 %v90, %v90
    %v137 = vmul.f32 %v91, %v91
    %v138 = vmul.f32 %v92, %v92
    %v139 = vmul.f32 %v93, %v93
    %v140 = vmul.f32 %v94, %v94
    %v141 = vmul.f32 %v95, %v95
    %v142 = vmul.f32 %v96, %v96
    %v143 = vmul.f32 %v97, %v97
    %v144 = vmul.f32 %v98, %v98
    %v145 = vmul.f32 %v99, %v99
    %v146 = vmul.f32 %v100, %v100
    %v147 = vmul.f32 %v101, %v101
    %v148 = vmul.f32 %v102, %v102
    %v149 = vmul.f32 %v103, %v103
    %v150 = vmul.f32 %v104, %v104
    %v151 = vmul.f32 %v105, %v105
    %v152 = vmul.f32 %v106, %v106
    %v153 = vmul.f32 %v107, %v107
    %v154 = vmul.f32 %v130, %v126
    %v155 = vmul.f32 %v131, %v126
    %v156 = vmul.f32 %v132, %v126
    %v157 = vmul.f32 %v133, %v126
    %v158 = vmul.f32 %v134, %v126
    %v159 = vmul.f32 %v135, %v126
    %v160 = vmul.f32 %v136, %v127
    %v161 = vmul.f32 %v137, %v127
    %v162 = vmul.f32 %v138, %v127
    %v163 = vmul.f32 %v139, %v127
    %v164 = vmul.f32 %v140, %v127
    %v165 = vmul.f32 %v141, %v127
    %v166 = vmul.f32 %v142, %v128
    %v167 = vmul.f32 %v143, %v128
    %v168 = vmul.f32 %v144, %v128
    %v169 = vmul.f32 %v145, %v128
    %v170 = vmul.f32 %v146, %v128
    %v171 = vmul.f32 %v147, %v128
    %v172 = vmul.f32 %v148, %v129
    %v173 = vmul.f32 %v149, %v129
    %v174 = vmul.f32 %v150, %v129
    %v175 = vmul.f32 %v151, %v129
    %v176 = vmul.f32 %v152, %v129
    %v177 = vmul.f32 %v153, %v129
    %v178 = vadd.f32 %v154, %v155
    %v179 = vadd.f32 %v178, %v156
    %v180 = vadd.f32 %v179, %v157
    %v181 = vadd.f32 %v180, %v158
    %v182 = vadd.f32 %v181, %v159
    %v183 = vadd.f32 %v182, %v160
    %v184 = vadd.f32 %v183, %v161
    %v185 = vadd.f32 %v184, %v162
    %v186 = vadd.f32 %v185, %v163
    %v187 = vadd.f32 %v186, %v164
    %v188 = vadd.f32 %v187, %v165
    %v189 = vadd.f32 %v188, %v166
    %v190 = vadd.f32 %v189, %v167
    %v191 = vadd.f32 %v190, %v168
    %v192 = vadd.f32 %v191, %v169
    %v193 = vadd.f32 %v192, %v170
    %v194 = vadd.f32 %v193, %v171
    %v195 = vadd.f32 %v194, %v172
    %v196 = vadd.f32 %v195, %v173
    %v197 = vadd.f32 %v196, %v174
    %v198 = vadd.f32 %v197, %v175
    %v199 = vadd.f32 %v198, %v176
    %v200 = vadd.f32 %v199, %v177
    %201 = vadd.xlane.f32.xlu0 %v200
    %v202 = vpop.xlane.xlu0 %201
    %v203 = vrot.slane %v202, 4
    %v204 = vadd.f32 %v202, %v203
    %v205 = vrot.slane %v204, 2
    %v206 = vadd.f32 %v204, %v205
    %v207 = vrot.slane %v206, 1
    %v208 = vadd.f32 %v206, %v207
    %s209 = vtos %v208
    %v210 = vstv %s209
    %211 = vst [vmem:[#allocation10] sm:$0xff] %v210
    %v212 = vld [vmem:[%s2] sm:$0x3f]
    %v213 = vld [vmem:[#allocation7] sm:$0x3f]
    %v215 = vlaneseq
    %v216 = vshrl.u32 %v215, 7
    %v217 = vsub.s32 0, %v216
    %v218 = vrot.slane %v213, %v217
    %v219 = vlaneseq
    %v220 = vshrl.u32 %v219, 7
    %v221 = vsub.s32 1, %v220
    %v222 = vrot.slane %v213, %v221
    %v223 = vlaneseq
    %v224 = vshrl.u32 %v223, 7
    %v225 = vsub.s32 2, %v224
    %v226 = vrot.slane %v213, %v225
    %v227 = vlaneseq
    %v228 = vshrl.u32 %v227, 7
    %v229 = vsub.s32 3, %v228
    %v230 = vrot.slane %v213, %v229
    %v231 = vlaneseq
    %v232 = vshrl.u32 %v231, 7
    %v233 = vsub.s32 4, %v232
    %v234 = vrot.slane %v213, %v233
    %v235 = vlaneseq
    %v236 = vshrl.u32 %v235, 7
    %v237 = vsub.s32 5, %v236
    %v238 = vrot.slane %v213, %v237
    %v245 = vmul.f32 %v84, %v218
    %v246 = vmul.f32 %v85, %v222
    %v247 = vmul.f32 %v86, %v226
    %v248 = vmul.f32 %v87, %v230
    %v249 = vmul.f32 %v88, %v234
    %v250 = vmul.f32 %v89, %v238
    %v251 = vmul.f32 %v90, %v218
    %v252 = vmul.f32 %v91, %v222
    %v253 = vmul.f32 %v92, %v226
    %v254 = vmul.f32 %v93, %v230
    %v255 = vmul.f32 %v94, %v234
    %v256 = vmul.f32 %v95, %v238
    %v257 = vmul.f32 %v96, %v218
    %v258 = vmul.f32 %v97, %v222
    %v259 = vmul.f32 %v98, %v226
    %v260 = vmul.f32 %v99, %v230
    %v261 = vmul.f32 %v100, %v234
    %v262 = vmul.f32 %v101, %v238
    %v263 = vmul.f32 %v102, %v218
    %v264 = vmul.f32 %v103, %v222
    %v265 = vmul.f32 %v104, %v226
    %v266 = vmul.f32 %v105, %v230
    %v267 = vmul.f32 %v106, %v234
    %v268 = vmul.f32 %v107, %v238
    %v270 = vlaneseq
    %v271 = vshrl.u32 %v270, 7
    %v272 = vsub.s32 0, %v271
    %v273 = vrot.slane %v212, %v272
    %v274 = vlaneseq
    %v275 = vshrl.u32 %v274, 7
    %v276 = vsub.s32 1, %v275
    %v277 = vrot.slane %v212, %v276
    %v278 = vlaneseq
    %v279 = vshrl.u32 %v278, 7
    %v280 = vsub.s32 2, %v279
    %v281 = vrot.slane %v212, %v280
    %v282 = vlaneseq
    %v283 = vshrl.u32 %v282, 7
    %v284 = vsub.s32 3, %v283
    %v285 = vrot.slane %v212, %v284
    %v286 = vlaneseq
    %v287 = vshrl.u32 %v286, 7
    %v288 = vsub.s32 4, %v287
    %v289 = vrot.slane %v212, %v288
    %v290 = vlaneseq
    %v291 = vshrl.u32 %v290, 7
    %v292 = vsub.s32 5, %v291
    %v293 = vrot.slane %v212, %v292
    %v300 = vadd.f32 %v245, %v273
    %v301 = vadd.f32 %v246, %v277
    %v302 = vadd.f32 %v247, %v281
    %v303 = vadd.f32 %v248, %v285
    %v304 = vadd.f32 %v249, %v289
    %v305 = vadd.f32 %v250, %v293
    %v306 = vadd.f32 %v251, %v273
    %v307 = vadd.f32 %v252, %v277
    %v308 = vadd.f32 %v253, %v281
    %v309 = vadd.f32 %v254, %v285
    %v310 = vadd.f32 %v255, %v289
    %v311 = vadd.f32 %v256, %v293
    %v312 = vadd.f32 %v257, %v273
    %v313 = vadd.f32 %v258, %v277
    %v314 = vadd.f32 %v259, %v281
    %v315 = vadd.f32 %v260, %v285
    %v316 = vadd.f32 %v261, %v289
    %v317 = vadd.f32 %v262, %v293
    %v318 = vadd.f32 %v263, %v273
    %v319 = vadd.f32 %v264, %v277
    %v320 = vadd.f32 %v265, %v281
    %v321 = vadd.f32 %v266, %v285
    %v322 = vadd.f32 %v267, %v289
    %v323 = vadd.f32 %v268, %v293
    %v324 = vmax.f32 %v300, 0.0
    %v325 = vmax.f32 %v301, 0.0
    %v326 = vmax.f32 %v302, 0.0
    %v327 = vmax.f32 %v303, 0.0
    %v328 = vmax.f32 %v304, 0.0
    %v329 = vmax.f32 %v305, 0.0
    %v330 = vmax.f32 %v306, 0.0
    %v331 = vmax.f32 %v307, 0.0
    %v332 = vmax.f32 %v308, 0.0
    %v333 = vmax.f32 %v309, 0.0
    %v334 = vmax.f32 %v310, 0.0
    %v335 = vmax.f32 %v311, 0.0
    %v336 = vmax.f32 %v312, 0.0
    %v337 = vmax.f32 %v313, 0.0
    %v338 = vmax.f32 %v314, 0.0
    %v339 = vmax.f32 %v315, 0.0
    %v340 = vmax.f32 %v316, 0.0
    %v341 = vmax.f32 %v317, 0.0
    %v342 = vmax.f32 %v318, 0.0
    %v343 = vmax.f32 %v319, 0.0
    %v344 = vmax.f32 %v320, 0.0
    %v345 = vmax.f32 %v321, 0.0
    %v346 = vmax.f32 %v322, 0.0
    %v347 = vmax.f32 %v323, 0.0
    %v348 = vmin.f32 %v324, 1.0
    %v349 = vmin.f32 %v325, 1.0
    %v350 = vmin.f32 %v326, 1.0
    %v351 = vmin.f32 %v327, 1.0
    %v352 = vmin.f32 %v328, 1.0
    %v353 = vmin.f32 %v329, 1.0
    %v354 = vmin.f32 %v330, 1.0
    %v355 = vmin.f32 %v331, 1.0
    %v356 = vmin.f32 %v332, 1.0
    %v357 = vmin.f32 %v333, 1.0
    %v358 = vmin.f32 %v334, 1.0
    %v359 = vmin.f32 %v335, 1.0
    %v360 = vmin.f32 %v336, 1.0
    %v361 = vmin.f32 %v337, 1.0
    %v362 = vmin.f32 %v338, 1.0
    %v363 = vmin.f32 %v339, 1.0
    %v364 = vmin.f32 %v340, 1.0
    %v365 = vmin.f32 %v341, 1.0
    %v366 = vmin.f32 %v342, 1.0
    %v367 = vmin.f32 %v343, 1.0
    %v368 = vmin.f32 %v344, 1.0
    %v369 = vmin.f32 %v345, 1.0
    %v370 = vmin.f32 %v346, 1.0
    %v371 = vmin.f32 %v347, 1.0
    %v372 = vsub.f32 %v348, %v273
    %v373 = vsub.f32 %v349, %v277
    %v374 = vsub.f32 %v350, %v281
    %v375 = vsub.f32 %v351, %v285
    %v376 = vsub.f32 %v352, %v289
    %v377 = vsub.f32 %v353, %v293
    %v378 = vsub.f32 %v354, %v273
    %v379 = vsub.f32 %v355, %v277
    %v380 = vsub.f32 %v356, %v281
    %v381 = vsub.f32 %v357, %v285
    %v382 = vsub.f32 %v358, %v289
    %v383 = vsub.f32 %v359, %v293
    %v384 = vsub.f32 %v360, %v273
    %v385 = vsub.f32 %v361, %v277
    %v386 = vsub.f32 %v362, %v281
    %v387 = vsub.f32 %v363, %v285
    %v388 = vsub.f32 %v364, %v289
    %v389 = vsub.f32 %v365, %v293
    %v390 = vsub.f32 %v366, %v273
    %v391 = vsub.f32 %v367, %v277
    %v392 = vsub.f32 %v368, %v281
    %v393 = vsub.f32 %v369, %v285
    %v394 = vsub.f32 %v370, %v289
    %v395 = vsub.f32 %v371, %v293
    %v396 = vrcp.pop %v218
    %v397 = vmul.f32 %v372, %v396
    %v398 = vrcp.pop %v222
    %v399 = vmul.f32 %v373, %v398
    %v400 = vrcp.pop %v226
    %v401 = vmul.f32 %v374, %v400
    %v402 = vrcp.pop %v230
    %v403 = vmul.f32 %v375, %v402
    %v404 = vrcp.pop %v234
    %v405 = vmul.f32 %v376, %v404
    %v406 = vrcp.pop %v238
    %v407 = vmul.f32 %v377, %v406
    %v408 = vmul.f32 %v378, %v396
    %v409 = vmul.f32 %v379, %v398
    %v410 = vmul.f32 %v380, %v400
    %v411 = vmul.f32 %v381, %v402
    %v412 = vmul.f32 %v382, %v404
    %v413 = vmul.f32 %v383, %v406
    %v414 = vmul.f32 %v384, %v396
    %v415 = vmul.f32 %v385, %v398
    %v416 = vmul.f32 %v386, %v400
    %v417 = vmul.f32 %v387, %v402
    %v418 = vmul.f32 %v388, %v404
    %v419 = vmul.f32 %v389, %v406
    %v420 = vmul.f32 %v390, %v396
    %v421 = vmul.f32 %v391, %v398
    %v422 = vmul.f32 %v392, %v400
    %v423 = vmul.f32 %v393, %v402
    %v424 = vmul.f32 %v394, %v404
    %v425 = vmul.f32 %v395, %v406
    %426 = vst [vmem:[#allocation9] sm:$0xff] %v397
    %427 = vst [vmem:[#allocation9 + $0x8] sm:$0xff] %v399
    %428 = vst [vmem:[#allocation9 + $0x10] sm:$0xff] %v401
    %429 = vst [vmem:[#allocation9 + $0x18] sm:$0xff] %v403
    %430 = vst [vmem:[#allocation9 + $0x20] sm:$0xff] %v405
    %431 = vst [vmem:[#allocation9 + $0x28] sm:$0xff] %v407
    %432 = vst [vmem:[#allocation9 + $0x30] sm:$0xff] %v408
    %433 = vst [vmem:[#allocation9 + $0x38] sm:$0xff] %v409
    %434 = vst [vmem:[#allocation9 + $0x40] sm:$0xff] %v410
    %435 = vst [vmem:[#allocation9 + $0x48] sm:$0xff] %v411
    %436 = vst [vmem:[#allocation9 + $0x50] sm:$0xff] %v412
    %437 = vst [vmem:[#allocation9 + $0x58] sm:$0xff] %v413
    %438 = vst [vmem:[#allocation9 + $0x60] sm:$0xff] %v414
    %439 = vst [vmem:[#allocation9 + $0x68] sm:$0xff] %v415
    %440 = vst [vmem:[#allocation9 + $0x70] sm:$0xff] %v416
    %441 = vst [vmem:[#allocation9 + $0x78] sm:$0xff] %v417
    %442 = vst [vmem:[#allocation9 + $0x80] sm:$0xff] %v418
    %443 = vst [vmem:[#allocation9 + $0x88] sm:$0xff] %v419
    %444 = vst [vmem:[#allocation9 + $0x90] sm:$0xff] %v420
    %445 = vst [vmem:[#allocation9 + $0x98] sm:$0xff] %v421
    %446 = vst [vmem:[#allocation9 + $0xa0] sm:$0xff] %v422
    %447 = vst [vmem:[#allocation9 + $0xa8] sm:$0xff] %v423
    %448 = vst [vmem:[#allocation9 + $0xb0] sm:$0xff] %v424
    %449 = vst [vmem:[#allocation9 + $0xb8] sm:$0xff] %v425
    // Predicated region
    $region29: #{tpu_custom_call.1} parent=1 // pred_check
      _
    $region30: #{tpu_custom_call.1} parent=1 // pred_check_branch
      %451 = sbr.rel (0) target = $region32
    $region31: #{tpu_custom_call.1} parent=1 // pred_region
      %s453 = ssub.s32 3072, 3072
      %454 = vsyncadd [#allocation6], %s453
      %s455 = sshll.u32 [#allocation9], 4
      %s456 = int_to_ptr.vmem [resolvable:$true] %s455
      %461 = dma.vmem_to_hbm [thread:$0]  %s456, 3072, %s4, [#allocation6], 768, 768, 48
    $region32: #{tpu_custom_call.1} parent=1 // pred_fallthru
      _
    // Predicated region
    $region33: #{tpu_custom_call.1} parent=1 // pred_check
      _
    $region34: #{tpu_custom_call.1} parent=1 // pred_check_branch
      %463 = sbr.rel (0) target = $region36
    $region35: #{tpu_custom_call.1} parent=1 // pred_region
      %s465 = ssub.s32 128, 128
      %466 = vsyncadd [#allocation11], %s465
      %s468 = sshll.u32 [#allocation10], 4
      %s469 = int_to_ptr.vmem [resolvable:$true] %s468
      %471 = dma.vmem_to_hbm [thread:$0]  %s469, 128, %s5, [#allocation11]
    $region36: #{tpu_custom_call.1} parent=1 // pred_fallthru
      _
    // Predicated region
    $region37: #{tpu_custom_call.1} parent=1 // pred_check
      _
    $region38: #{tpu_custom_call.1} parent=1 // pred_check_branch
      %473 = sbr.rel (0) target = $region40
    $region39: #{tpu_custom_call.1} parent=1 // pred_region
      %474 = dma.done [#allocation6], 3072
    $region40: #{tpu_custom_call.1} parent=1 // pred_fallthru
      _
    // Predicated region
    $region41: #{tpu_custom_call.1} parent=1 // pred_check
      _
    $region42: #{tpu_custom_call.1} parent=1 // pred_check_branch
      %476 = sbr.rel (0) target = $region44
    $region43: #{tpu_custom_call.1} parent=1 // pred_region
      %477 = dma.done [#allocation11], 128
    $region44: #{tpu_custom_call.1} parent=1 // pred_fallthru
      _
    %478 = vsyncpa [#allocation5], 1
    %479 = vsyncpa [#allocation8], 1
    %480 = vsyncpa [#allocation6], 1
    %481 = vsyncpa [#allocation11], 1

</llo_original>
